<compile_context>
chip_gen: v6e
topology: v6e:2x2x1
jax: 0.10.0
libtpu: 0.0.40
codegen_flags: <defaults>
</compile_context>

<pallas_src>
import jax
import jax.numpy as jnp
from jax.experimental import pallas as pl
from jax.experimental.pallas import tpu as pltpu


def _round_up(a, b):
    return (a + b - 1) // b * b


def _vmem_limit_bytes():
    cap = 64 * 1024 * 1024  # conservative default = v7x per-TC VMEM
    try:
        info = pltpu.get_tpu_info()
        cap = int(getattr(info, "vmem_capacity_bytes", cap))
    except Exception:
        pass
    return int(min(cap * 3 // 4, 100 * 1024 * 1024))


def _pick_tile_l(n_batch, L_out, K_pad, C_out_pad, vmem_limit, tile_l):
    l_full = _round_up(L_out, 128)
    if tile_l is None:
        # f32, double-buffered input + output blocks per lane column.
        per_col = 4 * 2 * (K_pad + C_out_pad)
        budget = max(vmem_limit // 2, 1 << 20)      # headroom for resident W etc.
        tile_l = max(128, min((budget // per_col) // 128 * 128, 2048))
    else:
        tile_l = max(128, _round_up(tile_l, 128))
    tile_l = min(tile_l, l_full)
    # Keep >= 2 grid steps total so megacore (v7x) can shard the parallel axes.
    if n_batch == 1 and tile_l >= l_full and l_full >= 256:
        tile_l = _round_up(l_full // 2, 128)
    return tile_l


# ---------------- kernel 1: per-sample Gram accumulator ----------------
def _stats_kernel(p_ref, g_ref):
    @pl.when(pl.program_id(1) == 0)
    def _():
        g_ref[...] = jnp.zeros_like(g_ref)

    p = p_ref[...]                                           # (K_pad, tile_l) f32
    # G += PT_tile @ PT_tile^T  (contraction over lanes / L positions, MXU)
    g_ref[...] += jax.lax.dot_general(
        p, p,
        dimension_numbers=(((1,), (1,)), ((), ())),
        preferred_element_type=jnp.float32)


# -------- kernel 2: conv-matmul + folded BN affine + LeakyReLU ----------
def _apply_kernel(p_ref, wt_ref, scale_ref, shift_ref, o_ref):
    # (C_out_pad, K_pad) @ (K_pad, tile_l) -> (C_out_pad, tile_l), lane-dense.
    z = jnp.dot(wt_ref[...], p_ref[...], preferred_element_type=jnp.float32)
    z = z * scale_ref[...] + shift_ref[...]                  # bias+BN folded
    o_ref[...] = jnp.maximum(z, 0.1 * z)                     # LeakyReLU(0.1)


def down_block(x, conv_w, conv_b, bn_gamma, bn_beta, *, k, s, tile_l=None):
    """x: (N, C_in, L) f32; conv_w: (C_out, C_in, k); returns (N, C_out, L_out)."""
    N, C_in, L = x.shape
    C_out = conv_w.shape[0]
    pad = k // 2                      # matches PyTorch padding=k//2 (exact for odd k)
    L_out = (L + 2 * pad - k) // s + 1
    M = N * L_out
    K = C_in * k

    # padded / augmented sizes
    K_pad = _round_up(K + 1, 8)                 # +1 "ones" row for column sums
    C_out_pad = _round_up(C_out, 8)
    vmem_limit = _vmem_limit_bytes()
    tile = _pick_tile_l(N, L_out, K_pad, C_out_pad, vmem_limit, tile_l)
    L_out_pad = _round_up(L_out, tile)
    num_l = L_out_pad // tile

    # --- glue: transposed im2col via k strided slices (no gather) ---
    xp = jnp.pad(x, ((0, 0), (0, 0), (pad, pad)))                       # (N, C_in, L+2p)
    taps = [jax.lax.slice_in_dim(xp, t, t + (L_out - 1) * s + 1, stride=s, axis=2)
            for t in range(k)]                                          # k x (N, C_in, L_out)
    pt = jnp.stack(taps, axis=2).reshape(N, K, L_out)                   # row index = c*k + t
    PT = jnp.pad(pt, ((0, 0), (0, K_pad - K), (0, L_out_pad - L_out)))  # (N, K_pad, L_out_pad)
    PT = PT.at[:, K, :L_out].set(1.0)                                   # valid-column marker

    # weight matrix: w_mat[c*k + t, o] = conv_w[o, c, t]; kernel uses its transpose.
    w_mat = conv_w.transpose(1, 2, 0).reshape(K, C_out).astype(jnp.float32)
    WT = jnp.zeros((C_out_pad, K_pad), jnp.float32).at[:C_out, :K].set(w_mat.T)

    # --- pass 1: per-sample Gram partials, summed in the wrapper ---
    gram_parts = pl.pallas_call(
        _stats_kernel,
        out_shape=jax.ShapeDtypeStruct((N, K_pad, K_pad), jnp.float32),
        grid=(N, num_l),
        in_specs=[pl.BlockSpec((None, K_pad, tile), lambda n, l: (n, 0, l))],
        out_specs=pl.BlockSpec((None, K_pad, K_pad), lambda n, l: (n, 0, 0)),
        compiler_params=pltpu.CompilerParams(
            dimension_semantics=("parallel", "arbitrary"),
            vmem_limit_bytes=vmem_limit),
    )(PT)
    G = gram_parts.sum(axis=0)                               # (K_pad, K_pad), tiny

    # --- tiny closed-form batch stats (training mode, biased, eps=1e-5) ---
    g_valid = G[:K, :K]                                      # P^T P
    csum = G[K, :K]                                          # per-feature column sums
    conv_sum = csum @ w_mat                                  # (C_out,)  sum_m (P @ W)
    mean = conv_sum / M + conv_b
    quad = jnp.sum(w_mat * (g_valid @ w_mat), axis=0)        # diag(W^T G W)
    ex2 = quad / M + 2.0 * conv_b * conv_sum / M + conv_b * conv_b
    var = jnp.maximum(ex2 - mean * mean, 0.0)
    inv = jax.lax.rsqrt(var + 1e-5)
    scale = bn_gamma * inv
    shift = bn_beta + (conv_b - mean) * scale
    scale_col = jnp.zeros((C_out_pad, 1), jnp.float32).at[:C_out, 0].set(scale)
    shift_col = jnp.zeros((C_out_pad, 1), jnp.float32).at[:C_out, 0].set(shift)

    # --- pass 2: single sweep, lane-dense along L_out, output already NCL ---
    out3 = pl.pallas_call(
        _apply_kernel,
        out_shape=jax.ShapeDtypeStruct((N, C_out_pad, L_out_pad), jnp.float32),
        grid=(N, num_l),
        in_specs=[pl.BlockSpec((None, K_pad, tile), lambda n, l: (n, 0, l)),
                  pl.BlockSpec((C_out_pad, K_pad), lambda n, l: (0, 0)),   # VMEM resident
                  pl.BlockSpec((C_out_pad, 1), lambda n, l: (0, 0)),       # VMEM resident
                  pl.BlockSpec((C_out_pad, 1), lambda n, l: (0, 0))],      # VMEM resident
        out_specs=pl.BlockSpec((None, C_out_pad, tile), lambda n, l: (n, 0, l)),
        compiler_params=pltpu.CompilerParams(
            dimension_semantics=("parallel", "parallel"),
            vmem_limit_bytes=vmem_limit),
    )(PT, WT, scale_col, shift_col)

    return out3[:, :C_out, :L_out]                           # already NCL


def reference(x, conv_w, conv_b, bn_gamma, bn_beta, *, k, s):
    pad = k // 2
    y = jax.lax.conv_general_dilated(
        x, conv_w, window_strides=(s,), padding=[(pad, pad)],
        dimension_numbers=("NCH", "OIH", "NCH"))
    y = y + conv_b[None, :, None]
    mean = y.mean(axis=(0, 2), keepdims=True)
    var = ((y - mean) ** 2).mean(axis=(0, 2), keepdims=True)
    y = (y - mean) / jnp.sqrt(var + 1e-5)
    y = y * bn_gamma[None, :, None] + bn_beta[None, :, None]
    return jnp.where(y >= 0, y, 0.1 * y)


def _run_case(key, N, ins, outs, k, s, L, tile_l=None):
    kx, kw, kb = jax.random.split(key, 3)
    x = jax.random.normal(kx, (N, ins, L), dtype=jnp.float32)
    conv_w = jax.random.normal(kw, (outs, ins, k), dtype=jnp.float32) * 0.2
    conv_b = jax.random.normal(kb, (outs,), dtype=jnp.float32) * 0.1
    bn_gamma = jnp.ones((outs,), dtype=jnp.float32)   # PyTorch BatchNorm1d defaults
    bn_beta = jnp.zeros((outs,), dtype=jnp.float32)

    out = down_block(x, conv_w, conv_b, bn_gamma, bn_beta, k=k, s=s, tile_l=tile_l)
    out = jax.block_until_ready(out)
    ref = reference(x, conv_w, conv_b, bn_gamma, bn_beta, k=k, s=s)
    assert out.shape == ref.shape, (out.shape, ref.shape)
    err = float(jnp.max(jnp.abs(out - ref)))
    assert jnp.allclose(out, ref, atol=1e-4, rtol=1e-4), err


if __name__ == "__main__":
    key = jax.random.PRNGKey(0)
    k1, k2 = jax.random.split(key)

    # DownBlock(ins=4, outs=8, k=3, s=2) on x of shape (N=2, C_in=4, L=16)
    _run_case(k1, N=2, ins=4, outs=8, k=3, s=2, L=16)

    # Multi-tile / padded-tail / non-8-multiple-channel case:
    # L_out=200 with tile_l=128 -> 2 L tiles per sample, C_out=6 padded to 8.
    _run_case(k2, N=2, ins=4, outs=6, k=5, s=2, L=400, tile_l=128)

    print("KERNEL_OK")
</pallas_src>

<mosaic_0001>
module attributes {stable_mosaic.version = 11 : i64} {
  func.func @_stats_kernel(%arg0: i32, %arg1: i32, %arg2: memref<1x16x128xf32, #tpu.memory_space<vmem>>, %arg3: memref<1x16x16xf32, #tpu.memory_space<vmem>>) attributes {dimension_semantics = [#tpu.dimension_semantics<parallel>, #tpu.dimension_semantics<arbitrary>], iteration_bounds = array<i64: 2, 1>, scalar_prefetch = 0 : i64, scratch_operands = 0 : i64, tpu.core_type = #tpu.core_type<tc>, window_params = [{transform_indices = @transform_0, window_bounds = array<i64: 1, 16, 128>}, {transform_indices = @transform_1, window_bounds = array<i64: 1, 16, 16>}]} {
    %c0_i32 = arith.constant 0 : i32
    %0 = arith.cmpi eq, %arg1, %c0_i32 : i32
    %1 = arith.extui %0 : i1 to i32
    %c0_i32_0 = arith.constant 0 : i32
    %2 = arith.cmpi ne, %1, %c0_i32_0 : i32
    scf.if %2 {
      %cst_9 = arith.constant 0.000000e+00 : f32
      %12 = vector.broadcast %cst_9 : f32 to vector<16x16xf32>
      %c0_10 = arith.constant 0 : index
      %c0_11 = arith.constant 0 : index
      %c0_12 = arith.constant 0 : index
      %13 = vector.load %arg3[%c0_10, %c0_11, %c0_12] : memref<1x16x16xf32, #tpu.memory_space<vmem>>, vector<1x16x16xf32>
      %14 = vector.shape_cast %13 : vector<1x16x16xf32> to vector<16x16xf32>
      %15 = vector.shape_cast %12 : vector<16x16xf32> to vector<1x16x16xf32>
      tpu.vector_store %arg3[%c0_10, %c0_11, %c0_12], %15 {strides = array<i32>} : memref<1x16x16xf32, #tpu.memory_space<vmem>>, vector<1x16x16xf32>,
    } else {
    }
    %c0 = arith.constant 0 : index
    %c0_1 = arith.constant 0 : index
    %c0_2 = arith.constant 0 : index
    %3 = vector.load %arg2[%c0, %c0_1, %c0_2] : memref<1x16x128xf32, #tpu.memory_space<vmem>>, vector<1x16x128xf32>
    %4 = vector.shape_cast %3 : vector<1x16x128xf32> to vector<16x128xf32>
    %c0_3 = arith.constant 0 : index
    %c0_4 = arith.constant 0 : index
    %c0_5 = arith.constant 0 : index
    %5 = vector.load %arg3[%c0_3, %c0_4, %c0_5] : memref<1x16x16xf32, #tpu.memory_space<vmem>>, vector<1x16x16xf32>
    %6 = vector.shape_cast %5 : vector<1x16x16xf32> to vector<16x16xf32>
    %cst = arith.constant dense<0.000000e+00> : vector<16x16xf32>
    %7 = tpu.matmul %4, %4, %cst {dimension_numbers = #tpu.dot_dimension_numbers<[1], [1], [0], [0], [0, 0, 1, 0], [], []>} : vector<16x128xf32>, vector<16x128xf32>, vector<16x16xf32> -> vector<16x16xf32>
    %8 = arith.addf %6, %7 : vector<16x16xf32>
    %c0_6 = arith.constant 0 : index
    %c0_7 = arith.constant 0 : index
    %c0_8 = arith.constant 0 : index
    %9 = vector.load %arg3[%c0_6, %c0_7, %c0_8] : memref<1x16x16xf32, #tpu.memory_space<vmem>>, vector<1x16x16xf32>
    %10 = vector.shape_cast %9 : vector<1x16x16xf32> to vector<16x16xf32>
    %11 = vector.shape_cast %8 : vector<16x16xf32> to vector<1x16x16xf32>
    tpu.vector_store %arg3[%c0_6, %c0_7, %c0_8], %11 {strides = array<i32>} : memref<1x16x16xf32, #tpu.memory_space<vmem>>, vector<1x16x16xf32>,
    return
  }
  func.func @transform_0(%arg0: i32, %arg1: i32) -> (i32, i32, i32) {
    %c0_i32 = arith.constant 0 : i32
    %c0_i32_0 = arith.constant 0 : i32
    return %arg0, %c0_i32, %arg1 : i32, i32, i32
  }
  func.func @transform_1(%arg0: i32, %arg1: i32) -> (i32, i32, i32) {
    %c0_i32 = arith.constant 0 : i32
    %c0_i32_0 = arith.constant 0 : i32
    %c0_i32_1 = arith.constant 0 : i32
    return %arg0, %c0_i32, %c0_i32_0 : i32, i32, i32
  }
}

</mosaic_0001>

<llo_original>
// kernel: tpu_custom_call.1
$region0: #{tpu_custom_call.1}
  #allocation0 [shape = 'u32[]', space=smem, size = 0x4, offset = 0x4, fixed_abs, tag = 'smem constant byte address 0x4 - core index']
  #allocation1 [shape = 'u32[144,128]{1,0:T(1,128)}', space=vmem, size = 0x12000, scoped, tag = 'internal scratch']
  %s0 = inlined_call_operand.hbm [shape: f32[2,16,128], index: 0, kind: input, shape index: {}]
  %s1 = inlined_call_operand.hbm [shape: f32[2,16,16], index: 1, kind: output, shape index: {}]
  %s2 = sld [smem:[#allocation0]]
  $region45: #{tpu_custom_call.1} parent=0
    _
  %s4 = ssub.s32 1, %s2
  %s5 = scalar_select 0, %s4, %s2
  $region1: #{tpu_custom_call.1} parent=0
    #allocation2 [shape = 'u8[16384]{0}', space=vmem, size = 0x4000, scoped, tag = 'input window, operand 0']
    #allocation3 [shape = 's32[2]{0}', space=sflag, size = 0x8, scoped, tag = 'scoped memory for tpu_custom_call.1']
    #allocation4 [shape = 's32[2]{0}', space=sflag, size = 0x8, scoped, tag = 'scoped memory for tpu_custom_call.1']
    #allocation5 [shape = 'u8[16384]{0}', space=vmem, size = 0x4000, scoped, tag = 'output window, operand 0']
    %6 = vsyncpa [#allocation3], 0
    %s7 = scalar_lea.sflag [#allocation3], 1
    %8 = vsyncpa %s7, 0
    %9 = vsyncpa [#allocation4], 0
    %s10 = scalar_lea.sflag [#allocation4], 1
    %11 = vsyncpa %s10, 0
    loop: start=0, step=1, limit=4
    $region2: #{tpu_custom_call.1} parent=1 // loop_pre_header
      _
    $region3: #{tpu_custom_call.1} parent=1 // loop_header
      %s13 = sphi 0, %s17
      %p14 = scmp.ge.s32.totalorder %s13, 4
      %s20 = sphi 0, %s32
      %s21 = sphi 0, %s28
      %s22 = sphi 0, %s20
      %s23 = sphi 0, %s21
      %s24 = sphi 0, %s22
      %s25 = sphi 0, %s23
      %s37 = sphi 0, %s39
      %s40 = sphi 0, %s37
      %s41 = sphi 0, %s40
      %s57 = sphi 0, %s41
      %s63 = sphi 0, %s65
      %s66 = sphi 0, %s63
      %s67 = sphi 0, %s66
      %s83 = sphi 0, %s67
    $region4: #{tpu_custom_call.1} parent=1 // loop_header_branch
      %16 = sbr.rel (%p14) target = $region8
    $region5: #{tpu_custom_call.1} parent=1 // loop_body
      %s18 = ssub.s32 %s13, 1
      %s19 = ssub.s32 %s13, 2
      %s26 = sadd.s32 1, %s21
      %p27 = scmp.ge.s32.totalorder %s26, 1
      %s28 = scalar_select %p27, 0, %s26
      %s29 = sadd.s32 1, %s20
      %s30 = scalar_select %p27, %s29, %s20
      %p31 = scmp.ge.s32.totalorder %s30, 2
      %s32 = scalar_select %p31, 0, %s30
      %s33 = ssub.s32 %s20, %s32
      %s34 = ssub.s32 %s21, %s28
      %s35 = sor.u32 %s33, %s34
      %p36 = scmp.eq.s32.totalorder %s35, 0
      %s38 = sadd.s32 %s37, 1
      %s39 = scalar_select %p36, %s37, %s38
      %p42 = pneg %p36
      %p43 = scmp.eq.s32.totalorder %s13, 1
      %p44 = por %p42, %p43
      %p45 = scmp.ne.s32.totalorder %s37, %s40
      %p46 = scmp.eq.s32.totalorder %s13, 0
      %p47 = por %p45, %p46
      %p48 = scmp.ne.s32.totalorder %s37, %s40
      %p49 = scmp.eq.s32.totalorder %s18, 1
      %p50 = por %p48, %p49
      %p51 = scmp.ne.s32.totalorder %s40, %s41
      %p52 = scmp.eq.s32.totalorder %s18, 0
      %p53 = por %p51, %p52
      %p54 = scmp.ne.s32.totalorder %s40, %s41
      %p55 = scmp.eq.s32.totalorder %s19, 1
      %p56 = por %p54, %p55
      %p58 = scmp.ne.s32.totalorder %s41, %s57
      %p59 = scmp.eq.s32.totalorder %s19, 0
      %p60 = por %p58, %p59
      %s61 = ssub.s32 %s20, %s32
      %p62 = scmp.eq.s32.totalorder %s61, 0
      %s64 = sadd.s32 %s63, 1
      %s65 = scalar_select %p62, %s63, %s64
      %p68 = pneg %p62
      %p69 = scmp.eq.s32.totalorder %s13, 1
      %p70 = por %p68, %p69
      %p71 = scmp.ne.s32.totalorder %s63, %s66
      %p72 = scmp.eq.s32.totalorder %s13, 0
      %p73 = por %p71, %p72
      %p74 = scmp.ne.s32.totalorder %s63, %s66
      %p75 = scmp.eq.s32.totalorder %s18, 1
      %p76 = por %p74, %p75
      %p77 = scmp.ne.s32.totalorder %s66, %s67
      %p78 = scmp.eq.s32.totalorder %s18, 0
      %p79 = por %p77, %p78
      %p80 = scmp.ne.s32.totalorder %s66, %s67
      %p81 = scmp.eq.s32.totalorder %s19, 1
      %p82 = por %p80, %p81
      %p84 = scmp.ne.s32.totalorder %s67, %s83
      %p85 = scmp.eq.s32.totalorder %s19, 0
      %p86 = por %p84, %p85
      %p87 = scmp.le.s32.totalorder 1, %s13
      %p88 = scmp.lt.s32.totalorder %s13, 3
      %p89 = pnand %p87, %p88
      %p90 = pneg %p89
      // Predicated region
      $region9: #{tpu_custom_call.1} parent=5 // pred_check
        _
      $region10: #{tpu_custom_call.1} parent=5 // pred_check_branch
        %92 = sbr.rel (%p89) target = $region12
      $region11: #{tpu_custom_call.1} parent=5 // pred_region
        %s93 = ssub.s32 %s13, 1
      $region12: #{tpu_custom_call.1} parent=5 // pred_fallthru
        _
      %p94 = scmp.lt.s32.totalorder %s13, 2
      // Predicated region
      $region13: #{tpu_custom_call.1} parent=5 // pred_check
        %p95 = pneg %p94
      $region14: #{tpu_custom_call.1} parent=5 // pred_check_branch
        %97 = sbr.rel (%p95) target = $region16
      $region15: #{tpu_custom_call.1} parent=5 // pred_region
        // Predicated region
        $region17: #{tpu_custom_call.1} parent=15 // pred_check
          %p98 = pneg %p47
        $region18: #{tpu_custom_call.1} parent=15 // pred_check_branch
          %100 = sbr.rel (%p98) target = $region20
        $region19: #{tpu_custom_call.1} parent=15 // pred_region
          %s101 = sand.u32 %s37, 1
          %s102 = scalar_lea.sflag [#allocation3], %s101
          %s103 = sand.u32 %s37, 1
          %s104 = smul.addr %s103, 16
          %s105 = scalar_lea.vmem [#allocation2], %s104
          %s107 = ssub.s32 256, 256
          %108 = vsyncadd %s102, %s107
          %s109 = smul.addr %s20, 2
          %s110 = sadd.s32 %s21, %s109
          %s111 = smul.addr %s110, 128
          %s112 = scalar_lea.hbm %s0, %s111
          %s113 = sshll.u32 %s105, 4
          %s114 = int_to_ptr.vmem [resolvable:$true] %s113
          %119 = dma.hbm_to_vmem [thread:$0]  %s112, 256, %s114, %s102, 128, 128, 8
        $region20: #{tpu_custom_call.1} parent=15 // pred_fallthru
          _
      $region16: #{tpu_custom_call.1} parent=5 // pred_fallthru
        _
      %p120 = scmp.le.s32.totalorder 1, %s13
      %p121 = scmp.lt.s32.totalorder %s13, 3
      %p122 = pnand %p120, %p121
      %p123 = pneg %p122
      // Predicated region
      $region21: #{tpu_custom_call.1} parent=5 // pred_check
        _
      $region22: #{tpu_custom_call.1} parent=5 // pred_check_branch
        %125 = sbr.rel (%p122) target = $region24
      $region23: #{tpu_custom_call.1} parent=5 // pred_region
        %s126 = ssub.s32 %s13, 1
        %s127 = sand.u32 %s40, 1
        %s128 = scalar_lea.sflag [#allocation3], %s127
        %s129 = sand.u32 %s40, 1
        %s130 = smul.addr %s129, 16
        %s131 = scalar_lea.vmem [#allocation2], %s130
        // Predicated region
        $region25: #{tpu_custom_call.1} parent=23 // pred_check
          %p132 = pneg %p53
        $region26: #{tpu_custom_call.1} parent=23 // pred_check_branch
          %134 = sbr.rel (%p132) target = $region28
        $region27: #{tpu_custom_call.1} parent=23 // pred_region
          %135 = dma.done %s128, 256
        $region28: #{tpu_custom_call.1} parent=23 // pred_fallthru
          _
        %s136 = sand.u32 %s40, 1
        %s137 = scalar_lea.sflag [#allocation3], %s136
        %s138 = sand.u32 %s40, 1
        %s139 = smul.addr %s138, 16
        %s140 = scalar_lea.vmem [#allocation2], %s139
        %p141 = pneg %p53
        %p142 = pneg %p50
        %p143 = pneg %p79
        %p144 = pneg %p76
        %s145 = sand.u32 %s66, 1
        %s146 = scalar_lea.sflag [#allocation4], %s145
        %s147 = sand.u32 %s66, 1
        %s148 = smul.addr %s147, 16
        %s149 = scalar_lea.vmem [#allocation5], %s148
        %p150 = scmp.eq.s32.totalorder %s23, 0
        // Predicated region
        $region29: #{tpu_custom_call.1} parent=23 // pred_check
          %p151 = pneg %p150
        $region30: #{tpu_custom_call.1} parent=23 // pred_check_branch
          %153 = sbr.rel (%p151) target = $region32
        $region31: #{tpu_custom_call.1} parent=23 // pred_region
          %vm154 = vcmask 130048
          %155 = vst.msk [vmem:[%s149] sm:$0xff] %vm154, 0.0
          %156 = vst.msk [vmem:[%s149 + $0x8] sm:$0xff] %vm154, 0.0
        $region32: #{tpu_custom_call.1} parent=23 // pred_fallthru
          _
        %v157 = vld [vmem:[%s131] sm:$0xff]
        %v158 = vld [vmem:[%s131 + $0x8] sm:$0xff]
        %v159 = vld [vmem:[%s149] sm:$0xff]
        %v160 = vld [vmem:[%s149 + $0x8] sm:$0xff]
        %161 = vmatprep.subr.mxu0 0.0
        %162 = vmatpush1.xpose.msra.mxu0 0.0
        %163 = vmatprep.subr.mxu0 0.0
        %164 = vmatpush1.xpose.msra.mxu0 0.0
        %165 = vmatprep.subr.mxu0 0.0
        %166 = vmatpush1.xpose.msra.mxu0 0.0
        %167 = vmatprep.subr.mxu0 0.0
        %168 = vmatpush1.xpose.msra.mxu0 0.0
        %169 = vmatprep.subr.mxu0 0.0
        %170 = vmatpush1.xpose.msra.mxu0 0.0
        %171 = vmatprep.subr.mxu0 0.0
        %172 = vmatpush1.xpose.msra.mxu0 0.0
        %173 = vmatprep.subr.mxu0 0.0
        %174 = vmatpush1.xpose.msra.mxu0 0.0
        %175 = vmatprep.subr.mxu0 0.0
        %176 = vmatpush1.xpose.msra.mxu0 0.0
        %177 = vmatprep.subr.mxu0 0.0
        %178 = vmatpush1.xpose.msra.mxu0 0.0
        %179 = vmatprep.subr.mxu0 0.0
        %180 = vmatpush1.xpose.msra.mxu0 0.0
        %181 = vmatprep.subr.mxu0 0.0
        %182 = vmatpush1.xpose.msra.mxu0 0.0
        %183 = vmatprep.subr.mxu0 0.0
        %184 = vmatpush1.xpose.msra.mxu0 0.0
        %185 = vmatprep.subr.mxu0 0.0
        %186 = vmatpush1.xpose.msra.mxu0 0.0
        %187 = vmatprep.subr.mxu0 0.0
        %188 = vmatpush1.xpose.msra.mxu0 0.0
        %189 = vmatprep.subr.mxu0 0.0
        %190 = vmatpush1.xpose.msra.mxu0 %v158
        %191 = vmatprep.subr.mxu0 0.0
        %192 = vmatpush1.xpose.msra.mxu0 %v157
        %193 = vmatprep.subr.mxu0 0.0
        %194 = vmatpush2.xpose.msra.mxu0 0.0
        %195 = vmatprep.subr.mxu0 0.0
        %196 = vmatpush2.xpose.msra.mxu0 0.0
        %197 = vmatprep.subr.mxu0 0.0
        %198 = vmatpush2.xpose.msra.mxu0 0.0
        %199 = vmatprep.subr.mxu0 0.0
        %200 = vmatpush2.xpose.msra.mxu0 0.0
        %201 = vmatprep.subr.mxu0 0.0
        %202 = vmatpush2.xpose.msra.mxu0 0.0
        %203 = vmatprep.subr.mxu0 0.0
        %204 = vmatpush2.xpose.msra.mxu0 0.0
        %205 = vmatprep.subr.mxu0 0.0
        %206 = vmatpush2.xpose.msra.mxu0 0.0
        %207 = vmatprep.subr.mxu0 0.0
        %208 = vmatpush2.xpose.msra.mxu0 0.0
        %209 = vmatprep.subr.mxu0 0.0
        %210 = vmatpush2.xpose.msra.mxu0 0.0
        %211 = vmatprep.subr.mxu0 0.0
        %212 = vmatpush2.xpose.msra.mxu0 0.0
        %213 = vmatprep.subr.mxu0 0.0
        %214 = vmatpush2.xpose.msra.mxu0 0.0
        %215 = vmatprep.subr.mxu0 0.0
        %216 = vmatpush2.xpose.msra.mxu0 0.0
        %217 = vmatprep.subr.mxu0 0.0
        %218 = vmatpush2.xpose.msra.mxu0 0.0
        %219 = vmatprep.subr.mxu0 0.0
        %220 = vmatpush2.xpose.msra.mxu0 0.0
        %221 = vmatprep.subr.mxu0 0.0
        %222 = vmatpush2.xpose.msra.mxu0 0.0
        %223 = vmatprep.subr.mxu0 0.0
        %224 = vmatpush2.xpose.msra.mxu0 0.0
        %225 = vmatprep.mubr.f32.mxu0 0.0
        %226 = vmatmul.mubr.f32.gmra.mxu0 %v157
        %v227 = vpop.f32.mrf.mxu0
        %v228 = vadd.f32 0.0, %v227
        %v229 = vpop.f32.mrf.mxu0
        %230 = vmatprep.mubr.f32.mxu0 0.0
        %231 = vmatmul.mubr.f32.gmra.mxu0 %v158
        %v232 = vpop.f32.mrf.mxu0
        %v233 = vadd.f32 0.0, %v232
        %v234 = vpop.f32.mrf.mxu0
        %235 = vdwg.mxu0
        %v236 = vadd.f32 %v159, %v228
        %v237 = vadd.f32 %v160, %v233
        %vm238 = vcmask 130048
        %239 = vst.msk [vmem:[%s149] sm:$0xff] %vm238, %v236
        %240 = vst.msk [vmem:[%s149 + $0x8] sm:$0xff] %vm238, %v237
        %s241 = sand.u32 %s66, 1
        %s242 = scalar_lea.sflag [#allocation4], %s241
        %s243 = sand.u32 %s66, 1
        %s244 = smul.addr %s243, 16
        %s245 = scalar_lea.vmem [#allocation5], %s244
        // Predicated region
        $region33: #{tpu_custom_call.1} parent=23 // pred_check
          %p246 = pneg %p76
        $region34: #{tpu_custom_call.1} parent=23 // pred_check_branch
          %248 = sbr.rel (%p246) target = $region36
        $region35: #{tpu_custom_call.1} parent=23 // pred_region
          %s250 = ssub.s32 256, 256
          %251 = vsyncadd %s242, %s250
          %s252 = smul.addr %s22, 2
          %s253 = smul.addr %s252, 128
          %s254 = scalar_lea.hbm %s1, %s253
          %s255 = sshll.u32 %s245, 4
          %s256 = int_to_ptr.vmem [resolvable:$true] %s255
          %261 = dma.vmem_to_hbm [thread:$0]  %s256, 256, %s254, %s242, 128, 128, 8
        $region36: #{tpu_custom_call.1} parent=23 // pred_fallthru
          _
      $region24: #{tpu_custom_call.1} parent=5 // pred_fallthru
        _
      %p262 = scmp.le.s32.totalorder 2, %s13
      // Predicated region
      $region37: #{tpu_custom_call.1} parent=5 // pred_check
        %p263 = pneg %p262
      $region38: #{tpu_custom_call.1} parent=5 // pred_check_branch
        %265 = sbr.rel (%p263) target = $region40
      $region39: #{tpu_custom_call.1} parent=5 // pred_region
        %s266 = ssub.s32 %s13, 2
        // Predicated region
        $region41: #{tpu_custom_call.1} parent=39 // pred_check
          %p267 = pneg %p82
        $region42: #{tpu_custom_call.1} parent=39 // pred_check_branch
          %269 = sbr.rel (%p267) target = $region44
        $region43: #{tpu_custom_call.1} parent=39 // pred_region
          %s270 = sand.u32 %s67, 1
          %s271 = scalar_lea.sflag [#allocation4], %s270
          %s272 = sand.u32 %s67, 1
          %s273 = smul.addr %s272, 16
          %s274 = scalar_lea.vmem [#allocation5], %s273
          %275 = dma.done %s271, 256
        $region44: #{tpu_custom_call.1} parent=39 // pred_fallthru
          _
      $region40: #{tpu_custom_call.1} parent=5 // pred_fallthru
        _
    $region6: #{tpu_custom_call.1} parent=1 // loop_footer
      %s17 = sadd.s32 1, %s13
    $region7: #{tpu_custom_call.1} parent=1 // loop_footer_branch
      %12 = sbr.rel target = $region3
    $region8: #{tpu_custom_call.1} parent=1 // loop_exit
      _
    %276 = vsyncpa [#allocation3], 1
    %s277 = scalar_lea.sflag [#allocation3], 1
    %278 = vsyncpa %s277, 1
    %279 = vsyncpa [#allocation4], 1
    %s280 = scalar_lea.sflag [#allocation4], 1
    %281 = vsyncpa %s280, 1

</llo_original>
